<compile_context>
chip_gen: v5e
topology: v5e:2x2
jax: 0.10.0
libtpu: 0.0.40
codegen_flags: <defaults>
</compile_context>

<pallas_src>
import jax
import jax.numpy as jnp
from jax.experimental import pallas as pl
from jax.experimental.pallas import tpu as pltpu


_LANE = 128
_MAX_LANE_TILE = 32768      # cap on the spatial (lane) tile
_MAX_BLOCK_LANES = 32768    # cap on bb * ts  ->  (C_in+C_out)*4B*32768 ≈ 1.5 MiB/step (f32)


def _round_up(x, m):
    return (x + m - 1) // m * m


def _cdiv(a, b):
    return -(-a // b)


def _shared_conv1x1_kernel(x_ref, w_ref, b_ref, o_ref):
    # x_ref: (bb, c_in, ts)   w_ref: (c_out, c_in)   b_ref: (c_out, 1)
    # o_ref: (bb, c_out, ts)  -- ts is a multiple of 128, so loads/stores are lane-dense
    x = x_ref[...].astype(jnp.float32)        # (bb, c_in, ts)
    w = w_ref[...].astype(jnp.float32)        # (c_out, c_in)
    bias = b_ref[...].astype(jnp.float32)     # (c_out, 1)
    c_in = x.shape[1]

    # Tiny channel counts -> pure VPU broadcast-multiply-accumulate.
    # (HBM-bound kernel; an (8,4)x(4,TS) matmul would use <1% of the MXU.)
    # c_in is static, so this Python loop unrolls at trace time.
    acc = w[None, :, 0:1] * x[:, 0:1, :]      # (bb, c_out, ts)
    for c in range(1, c_in):
        acc = acc + w[None, :, c:c + 1] * x[:, c:c + 1, :]

    o_ref[...] = (acc + bias[None, :, :]).astype(o_ref.dtype)


def shared_conv1x1_batched(x_stacked, weight, bias):
    """Apply the shared 1x1 conv to a stack of same-shape inputs.

    x_stacked: (L, N, C_in, H, W), weight: (C_out, C_in), bias: (C_out,)
    returns:   (L, N, C_out, H, W)
    """
    l, n, c_in, h, w_sp = x_stacked.shape
    c_out = weight.shape[0]
    b = l * n
    s = h * w_sp

    # NCHW is already channel-major per sample -> pure reshape, no transpose.
    x = x_stacked.reshape(b, c_in, s)

    # Pad spatial only to the 128-lane boundary (no-op when S % 128 == 0);
    # partial edge tiles along the grid are handled by Pallas boundary masking.
    s_pad = _round_up(s, _LANE)
    if s_pad != s:
        x = jnp.pad(x, ((0, 0), (0, 0), (0, s_pad - s)))

    # Lane tile + batch block: pack several samples into each grid step so the
    # per-step DMA is large enough to amortize the fixed per-step cost.
    ts = min(s_pad, _MAX_LANE_TILE)                     # multiple of 128
    bb_max = max(1, min(b, _MAX_BLOCK_LANES // ts))
    bb = _cdiv(b, _cdiv(b, bb_max))                     # balanced batch blocks

    grid_b = _cdiv(b, bb)
    grid_s = _cdiv(s_pad, ts)

    # Larger axis first so the v7x megacore split over "parallel" dims balances.
    if grid_b >= grid_s:
        grid = (grid_b, grid_s)

        def xo_map(i, j):
            return (i, 0, j)
    else:
        grid = (grid_s, grid_b)

        def xo_map(j, i):
            return (i, 0, j)

    def wb_map(*_):
        return (0, 0)

    b2d = bias.reshape(c_out, 1)
    itemsize = jnp.dtype(x_stacked.dtype).itemsize
    cost = pl.CostEstimate(
        flops=2 * b * c_out * c_in * s,
        bytes_accessed=itemsize * (b * s * (c_in + c_out) + c_out * c_in + c_out),
        transcendentals=0,
    )

    out = pl.pallas_call(
        _shared_conv1x1_kernel,
        out_shape=jax.ShapeDtypeStruct((b, c_out, s_pad), x_stacked.dtype),
        grid_spec=pltpu.PrefetchScalarGridSpec(
            num_scalar_prefetch=0,
            grid=grid,
            in_specs=[
                # x: (bb samples, all input channels, one lane tile) per step.
                pl.BlockSpec((bb, c_in, ts), xo_map),
                # shared weight: full array, resident across the whole grid.
                pl.BlockSpec((c_out, c_in), wb_map),
                # shared bias: full array, resident across the whole grid.
                pl.BlockSpec((c_out, 1), wb_map),
            ],
            out_specs=pl.BlockSpec((bb, c_out, ts), xo_map),
        ),
        compiler_params=pltpu.CompilerParams(
            dimension_semantics=("parallel", "parallel"),
            vmem_limit_bytes=32 * 1024 * 1024,   # explicit: also covers v5e's 16 MiB default
        ),
        cost_estimate=cost,
    )(x, weight, b2d)

    if s_pad != s:
        out = out[:, :, :s]
    return out.reshape(l, n, c_out, h, w_sp)


@jax.jit
def shared_forward(inputs, weight, bias):
    """Shared(module).forward: same module (same params) applied to every input.

    Inputs with identical (shape, dtype) are fused into a single pallas_call;
    the whole thing runs under one jit so stack/pad/slice fuse with the kernel.
    """
    groups = {}
    for idx, x in enumerate(inputs):
        groups.setdefault((x.shape, x.dtype), []).append(idx)

    outs = [None] * len(inputs)
    for _, idxs in groups.items():
        stacked = jnp.stack([inputs[i] for i in idxs], axis=0)
        res = shared_conv1x1_batched(stacked, weight, bias)
        for j, i in enumerate(idxs):
            outs[i] = res[j]
    return outs


if __name__ == "__main__":
    key = jax.random.PRNGKey(0)
    k_w, k_b, k0, k1, k2 = jax.random.split(key, 5)

    N, C_IN, H, W, C_OUT = 2, 4, 16, 16, 8

    # deterministic "module" parameters (shared across all list elements)
    weight = jax.random.normal(k_w, (C_OUT, C_IN), jnp.float32) * 0.1
    bias = jax.random.normal(k_b, (C_OUT,), jnp.float32) * 0.1

    # list of inputs, as in Shared.forward(inputs)
    inputs = [jax.random.normal(k, (N, C_IN, H, W), jnp.float32)
              for k in (k0, k1, k2)]

    outs = shared_forward(inputs, weight, bias)
    outs = jax.block_until_ready(outs)

    # plain-JAX reference check (1x1 conv == channel matmul)
    for x, o in zip(inputs, outs):
        ref = jnp.einsum('nchw,oc->nohw', x, weight) + bias[None, :, None, None]
        assert o.shape == (N, C_OUT, H, W)
        assert jnp.allclose(o, ref, atol=1e-4, rtol=1e-4)

    print("KERNEL_OK")
</pallas_src>

<mosaic_0001>
module attributes {stable_mosaic.version = 11 : i64} {
  func.func @_shared_conv1x1_kernel(%arg0: i32, %arg1: i32, %arg2: memref<6x4x256xf32, #tpu.memory_space<vmem>>, %arg3: memref<8x4xf32, #tpu.memory_space<vmem>>, %arg4: memref<8x1xf32, #tpu.memory_space<vmem>>, %arg5: memref<6x8x256xf32, #tpu.memory_space<vmem>>) attributes {dimension_semantics = [#tpu.dimension_semantics<parallel>, #tpu.dimension_semantics<parallel>], iteration_bounds = array<i64: 1, 1>, scalar_prefetch = 0 : i64, scratch_operands = 0 : i64, tpu.core_type = #tpu.core_type<tc>, window_params = [{transform_indices = @transform_0, window_bounds = array<i64: 6, 4, 256>}, {pipeline_mode = #tpu.pipeline_mode<synchronous>, transform_indices = @transform_1, window_bounds = array<i64: 8, 4>}, {pipeline_mode = #tpu.pipeline_mode<synchronous>, transform_indices = @transform_2, window_bounds = array<i64: 8, 1>}, {transform_indices = @transform_3, window_bounds = array<i64: 6, 8, 256>}]} {
    %c0 = arith.constant 0 : index
    %c0_0 = arith.constant 0 : index
    %c0_1 = arith.constant 0 : index
    %0 = vector.load %arg2[%c0, %c0_0, %c0_1] : memref<6x4x256xf32, #tpu.memory_space<vmem>>, vector<6x4x256xf32>
    %c0_2 = arith.constant 0 : index
    %c0_3 = arith.constant 0 : index
    %1 = vector.load %arg3[%c0_2, %c0_3] : memref<8x4xf32, #tpu.memory_space<vmem>>, vector<8x4xf32>
    %c0_4 = arith.constant 0 : index
    %c0_5 = arith.constant 0 : index
    %2 = vector.load %arg4[%c0_4, %c0_5] : memref<8x1xf32, #tpu.memory_space<vmem>>, vector<8x1xf32>
    %3 = vector.extract_strided_slice %1 {offsets = [0, 0], sizes = [8, 1], strides = [1, 1]} : vector<8x4xf32> to vector<8x1xf32>
    %4 = vector.shape_cast %3 : vector<8x1xf32> to vector<1x8x1xf32>
    %5 = vector.extract_strided_slice %0 {offsets = [0, 0, 0], sizes = [6, 1, 256], strides = [1, 1, 1]} : vector<6x4x256xf32> to vector<6x1x256xf32>
    %6 = vector.broadcast %4 : vector<1x8x1xf32> to vector<6x8x256xf32>
    %7 = vector.broadcast %5 : vector<6x1x256xf32> to vector<6x8x256xf32>
    %8 = arith.mulf %6, %7 : vector<6x8x256xf32>
    %9 = vector.extract_strided_slice %1 {offsets = [0, 1], sizes = [8, 1], strides = [1, 1]} : vector<8x4xf32> to vector<8x1xf32>
    %10 = vector.shape_cast %9 : vector<8x1xf32> to vector<1x8x1xf32>
    %11 = vector.extract_strided_slice %0 {offsets = [0, 1, 0], sizes = [6, 1, 256], strides = [1, 1, 1]} : vector<6x4x256xf32> to vector<6x1x256xf32>
    %12 = vector.broadcast %10 : vector<1x8x1xf32> to vector<6x8x256xf32>
    %13 = vector.broadcast %11 : vector<6x1x256xf32> to vector<6x8x256xf32>
    %14 = arith.mulf %12, %13 : vector<6x8x256xf32>
    %15 = arith.addf %8, %14 : vector<6x8x256xf32>
    %16 = vector.extract_strided_slice %1 {offsets = [0, 2], sizes = [8, 1], strides = [1, 1]} : vector<8x4xf32> to vector<8x1xf32>
    %17 = vector.shape_cast %16 : vector<8x1xf32> to vector<1x8x1xf32>
    %18 = vector.extract_strided_slice %0 {offsets = [0, 2, 0], sizes = [6, 1, 256], strides = [1, 1, 1]} : vector<6x4x256xf32> to vector<6x1x256xf32>
    %19 = vector.broadcast %17 : vector<1x8x1xf32> to vector<6x8x256xf32>
    %20 = vector.broadcast %18 : vector<6x1x256xf32> to vector<6x8x256xf32>
    %21 = arith.mulf %19, %20 : vector<6x8x256xf32>
    %22 = arith.addf %15, %21 : vector<6x8x256xf32>
    %23 = vector.extract_strided_slice %1 {offsets = [0, 3], sizes = [8, 1], strides = [1, 1]} : vector<8x4xf32> to vector<8x1xf32>
    %24 = vector.shape_cast %23 : vector<8x1xf32> to vector<1x8x1xf32>
    %25 = vector.extract_strided_slice %0 {offsets = [0, 3, 0], sizes = [6, 1, 256], strides = [1, 1, 1]} : vector<6x4x256xf32> to vector<6x1x256xf32>
    %26 = vector.broadcast %24 : vector<1x8x1xf32> to vector<6x8x256xf32>
    %27 = vector.broadcast %25 : vector<6x1x256xf32> to vector<6x8x256xf32>
    %28 = arith.mulf %26, %27 : vector<6x8x256xf32>
    %29 = arith.addf %22, %28 : vector<6x8x256xf32>
    %30 = vector.shape_cast %2 : vector<8x1xf32> to vector<1x8x1xf32>
    %31 = vector.broadcast %30 : vector<1x8x1xf32> to vector<6x8x256xf32>
    %32 = arith.addf %29, %31 : vector<6x8x256xf32>
    %c0_6 = arith.constant 0 : index
    %c0_7 = arith.constant 0 : index
    %c0_8 = arith.constant 0 : index
    %33 = vector.load %arg5[%c0_6, %c0_7, %c0_8] : memref<6x8x256xf32, #tpu.memory_space<vmem>>, vector<6x8x256xf32>
    tpu.vector_store %arg5[%c0_6, %c0_7, %c0_8], %32 {strides = array<i32>} : memref<6x8x256xf32, #tpu.memory_space<vmem>>, vector<6x8x256xf32>,
    return
  }
  func.func @transform_0(%arg0: i32, %arg1: i32) -> (i32, i32, i32) {
    %c0_i32 = arith.constant 0 : i32
    %c0_i32_0 = arith.constant 0 : i32
    return %arg0, %c0_i32, %arg1 : i32, i32, i32
  }
  func.func @transform_1(%arg0: i32, %arg1: i32) -> (i32, i32) {
    %c0_i32 = arith.constant 0 : i32
    %c0_i32_0 = arith.constant 0 : i32
    %c0_i32_1 = arith.constant 0 : i32
    return %c0_i32, %c0_i32_0 : i32, i32
  }
  func.func @transform_2(%arg0: i32, %arg1: i32) -> (i32, i32) {
    %c0_i32 = arith.constant 0 : i32
    %c0_i32_0 = arith.constant 0 : i32
    %c0_i32_1 = arith.constant 0 : i32
    return %c0_i32, %c0_i32_0 : i32, i32
  }
  func.func @transform_3(%arg0: i32, %arg1: i32) -> (i32, i32, i32) {
    %c0_i32 = arith.constant 0 : i32
    %c0_i32_0 = arith.constant 0 : i32
    return %arg0, %c0_i32, %arg1 : i32, i32, i32
  }
}

</mosaic_0001>

<llo_original>
// kernel: squeeze.3
$region0: #{squeeze.3}
  %s0 = inlined_call_operand.vmem [shape: f32[2,8,256], index: 0, kind: input, shape index: {}]
  %s1 = inlined_call_operand.hbm [shape: f32[2,8,16,16], index: 1, kind: output, shape index: {}]
  $region1: #{squeeze.3} parent=0
    #allocation0 [shape = 'u8[131072]{0}', space=vmem, size = 0x20000, scoped, tag = 'operand span for operand 1']
    #allocation1 [shape = 's32[1]{0}', space=sflag, size = 0x4, scoped, tag = 'scoped memory for squeeze.3']
    %2 = vsyncpa [#allocation1], 0
    %v3 = vld [vmem:[%s0] sm:$0xff]
    %vm4 = vcmask 130048
    %5 = vst.msk [vmem:[#allocation0] ss:$16 sm:$0x3] %vm4, %v3
    %6 = vst.msk [vmem:[#allocation0] ss:$16 sm:$0xc] %vm4, %v3
    %7 = vst.msk [vmem:[#allocation0] ss:$16 sm:$0x30] %vm4, %v3
    %8 = vst.msk [vmem:[#allocation0] ss:$16 sm:$0xc0] %vm4, %v3
    %s9 = scalar_lea.vmem %s0, 8
    %v10 = vld [vmem:[%s9] sm:$0xff]
    %vm11 = vcmask 130048
    %s12 = scalar_lea.vmem [#allocation0], 8
    %13 = vst.msk [vmem:[%s12] ss:$16 sm:$0x3] %vm11, %v10
    %s14 = scalar_lea.vmem [#allocation0], 8
    %15 = vst.msk [vmem:[%s14] ss:$16 sm:$0xc] %vm11, %v10
    %s16 = scalar_lea.vmem [#allocation0], 8
    %17 = vst.msk [vmem:[%s16] ss:$16 sm:$0x30] %vm11, %v10
    %s18 = scalar_lea.vmem [#allocation0], 8
    %19 = vst.msk [vmem:[%s18] ss:$16 sm:$0xc0] %vm11, %v10
    %s20 = scalar_lea.vmem %s0, 16
    %v21 = vld [vmem:[%s20] sm:$0xff]
    %vm22 = vcmask 130048
    %s23 = scalar_lea.vmem [#allocation0], 128
    %24 = vst.msk [vmem:[%s23] ss:$16 sm:$0x3] %vm22, %v21
    %s25 = scalar_lea.vmem [#allocation0], 128
    %26 = vst.msk [vmem:[%s25] ss:$16 sm:$0xc] %vm22, %v21
    %s27 = scalar_lea.vmem [#allocation0], 128
    %28 = vst.msk [vmem:[%s27] ss:$16 sm:$0x30] %vm22, %v21
    %s29 = scalar_lea.vmem [#allocation0], 128
    %30 = vst.msk [vmem:[%s29] ss:$16 sm:$0xc0] %vm22, %v21
    %s31 = scalar_lea.vmem %s0, 24
    %v32 = vld [vmem:[%s31] sm:$0xff]
    %vm33 = vcmask 130048
    %s34 = scalar_lea.vmem [#allocation0], 136
    %35 = vst.msk [vmem:[%s34] ss:$16 sm:$0x3] %vm33, %v32
    %s36 = scalar_lea.vmem [#allocation0], 136
    %37 = vst.msk [vmem:[%s36] ss:$16 sm:$0xc] %vm33, %v32
    %s38 = scalar_lea.vmem [#allocation0], 136
    %39 = vst.msk [vmem:[%s38] ss:$16 sm:$0x30] %vm33, %v32
    %s40 = scalar_lea.vmem [#allocation0], 136
    %41 = vst.msk [vmem:[%s40] ss:$16 sm:$0xc0] %vm33, %v32
    %v42 = vld.sshfl [vmem:[%s0] sm:$0xff pattern:$0xb3a29180]
    %43 = vrot.lane.b32.xlu0 %v42, 112
    %v44 = vpop.permute.xlu0 %43
    %vm45 = vcmask 130048
    %s46 = scalar_lea.vmem [#allocation0], 1
    %47 = vst.msk [vmem:[%s46] ss:$8 sm:$0xf] %vm45, %v44
    %s48 = scalar_lea.vmem [#allocation0], 1
    %49 = vst.msk [vmem:[%s48] ss:$8 sm:$0xf0] %vm45, %v44
    %s50 = scalar_lea.vmem %s0, 4
    %v51 = vld.sshfl [vmem:[%s50] sm:$0xff pattern:$0xb3a29180]
    %52 = vrot.lane.b32.xlu0 %v51, 112
    %v53 = vpop.permute.xlu0 %52
    %vm54 = vcmask 130048
    %s55 = scalar_lea.vmem [#allocation0], 65
    %56 = vst.msk [vmem:[%s55] ss:$8 sm:$0xf] %vm54, %v53
    %s57 = scalar_lea.vmem [#allocation0], 65
    %58 = vst.msk [vmem:[%s57] ss:$8 sm:$0xf0] %vm54, %v53
    %s59 = scalar_lea.vmem %s0, 16
    %v60 = vld.sshfl [vmem:[%s59] sm:$0xff pattern:$0xb3a29180]
    %61 = vrot.lane.b32.xlu0 %v60, 112
    %v62 = vpop.permute.xlu0 %61
    %vm63 = vcmask 130048
    %s64 = scalar_lea.vmem [#allocation0], 129
    %65 = vst.msk [vmem:[%s64] ss:$8 sm:$0xf] %vm63, %v62
    %s66 = scalar_lea.vmem [#allocation0], 129
    %67 = vst.msk [vmem:[%s66] ss:$8 sm:$0xf0] %vm63, %v62
    %s68 = scalar_lea.vmem %s0, 20
    %v69 = vld.sshfl [vmem:[%s68] sm:$0xff pattern:$0xb3a29180]
    %70 = vrot.lane.b32.xlu0 %v69, 112
    %v71 = vpop.permute.xlu0 %70
    %vm72 = vcmask 130048
    %s73 = scalar_lea.vmem [#allocation0], 193
    %74 = vst.msk [vmem:[%s73] ss:$8 sm:$0xf] %vm72, %v71
    %s75 = scalar_lea.vmem [#allocation0], 193
    %76 = vst.msk [vmem:[%s75] ss:$8 sm:$0xf0] %vm72, %v71
    %v77 = vld.sshfl [vmem:[%s0] sm:$0xff pattern:$0xb3a29180]
    %78 = vrot.lane.b32.xlu0 %v77, 96
    %v79 = vpop.permute.xlu0 %78
    %vm80 = vcmask 130048
    %s81 = scalar_lea.vmem [#allocation0], 2
    %82 = vst.msk [vmem:[%s81] ss:$8 sm:$0xf] %vm80, %v79
    %s83 = scalar_lea.vmem [#allocation0], 2
    %84 = vst.msk [vmem:[%s83] ss:$8 sm:$0xf0] %vm80, %v79
    %s85 = scalar_lea.vmem %s0, 4
    %v86 = vld.sshfl [vmem:[%s85] sm:$0xff pattern:$0xb3a29180]
    %87 = vrot.lane.b32.xlu0 %v86, 96
    %v88 = vpop.permute.xlu0 %87
    %vm89 = vcmask 130048
    %s90 = scalar_lea.vmem [#allocation0], 66
    %91 = vst.msk [vmem:[%s90] ss:$8 sm:$0xf] %vm89, %v88
    %s92 = scalar_lea.vmem [#allocation0], 66
    %93 = vst.msk [vmem:[%s92] ss:$8 sm:$0xf0] %vm89, %v88
    %s94 = scalar_lea.vmem %s0, 16
    %v95 = vld.sshfl [vmem:[%s94] sm:$0xff pattern:$0xb3a29180]
    %96 = vrot.lane.b32.xlu0 %v95, 96
    %v97 = vpop.permute.xlu0 %96
    %vm98 = vcmask 130048
    %s99 = scalar_lea.vmem [#allocation0], 130
    %100 = vst.msk [vmem:[%s99] ss:$8 sm:$0xf] %vm98, %v97
    %s101 = scalar_lea.vmem [#allocation0], 130
    %102 = vst.msk [vmem:[%s101] ss:$8 sm:$0xf0] %vm98, %v97
    %s103 = scalar_lea.vmem %s0, 20
    %v104 = vld.sshfl [vmem:[%s103] sm:$0xff pattern:$0xb3a29180]
    %105 = vrot.lane.b32.xlu0 %v104, 96
    %v106 = vpop.permute.xlu0 %105
    %vm107 = vcmask 130048
    %s108 = scalar_lea.vmem [#allocation0], 194
    %109 = vst.msk [vmem:[%s108] ss:$8 sm:$0xf] %vm107, %v106
    %s110 = scalar_lea.vmem [#allocation0], 194
    %111 = vst.msk [vmem:[%s110] ss:$8 sm:$0xf0] %vm107, %v106
    %v112 = vld.sshfl [vmem:[%s0] sm:$0xff pattern:$0xb3a29180]
    %113 = vrot.lane.b32.xlu0 %v112, 80
    %v114 = vpop.permute.xlu0 %113
    %vm115 = vcmask 130048
    %s116 = scalar_lea.vmem [#allocation0], 3
    %117 = vst.msk [vmem:[%s116] ss:$8 sm:$0xf] %vm115, %v114
    %s118 = scalar_lea.vmem [#allocation0], 3
    %119 = vst.msk [vmem:[%s118] ss:$8 sm:$0xf0] %vm115, %v114
    %s120 = scalar_lea.vmem %s0, 4
    %v121 = vld.sshfl [vmem:[%s120] sm:$0xff pattern:$0xb3a29180]
    %122 = vrot.lane.b32.xlu0 %v121, 80
    %v123 = vpop.permute.xlu0 %122
    %vm124 = vcmask 130048
    %s125 = scalar_lea.vmem [#allocation0], 67
    %126 = vst.msk [vmem:[%s125] ss:$8 sm:$0xf] %vm124, %v123
    %s127 = scalar_lea.vmem [#allocation0], 67
    %128 = vst.msk [vmem:[%s127] ss:$8 sm:$0xf0] %vm124, %v123
    %s129 = scalar_lea.vmem %s0, 16
    %v130 = vld.sshfl [vmem:[%s129] sm:$0xff pattern:$0xb3a29180]
    %131 = vrot.lane.b32.xlu0 %v130, 80
    %v132 = vpop.permute.xlu0 %131
    %vm133 = vcmask 130048
    %s134 = scalar_lea.vmem [#allocation0], 131
    %135 = vst.msk [vmem:[%s134] ss:$8 sm:$0xf] %vm133, %v132
    %s136 = scalar_lea.vmem [#allocation0], 131
    %137 = vst.msk [vmem:[%s136] ss:$8 sm:$0xf0] %vm133, %v132
    %s138 = scalar_lea.vmem %s0, 20
    %v139 = vld.sshfl [vmem:[%s138] sm:$0xff pattern:$0xb3a29180]
    %140 = vrot.lane.b32.xlu0 %v139, 80
    %v141 = vpop.permute.xlu0 %140
    %vm142 = vcmask 130048
    %s143 = scalar_lea.vmem [#allocation0], 195
    %144 = vst.msk [vmem:[%s143] ss:$8 sm:$0xf] %vm142, %v141
    %s145 = scalar_lea.vmem [#allocation0], 195
    %146 = vst.msk [vmem:[%s145] ss:$8 sm:$0xf0] %vm142, %v141
    %v147 = vld.sshfl [vmem:[%s0] sm:$0xff pattern:$0xb3a29180]
    %148 = vrot.lane.b32.xlu0 %v147, 64
    %v149 = vpop.permute.xlu0 %148
    %vm150 = vcmask 130048
    %s151 = scalar_lea.vmem [#allocation0], 4
    %152 = vst.msk [vmem:[%s151] ss:$8 sm:$0xf] %vm150, %v149
    %s153 = scalar_lea.vmem [#allocation0], 4
    %154 = vst.msk [vmem:[%s153] ss:$8 sm:$0xf0] %vm150, %v149
    %s155 = scalar_lea.vmem %s0, 4
    %v156 = vld.sshfl [vmem:[%s155] sm:$0xff pattern:$0xb3a29180]
    %157 = vrot.lane.b32.xlu0 %v156, 64
    %v158 = vpop.permute.xlu0 %157
    %vm159 = vcmask 130048
    %s160 = scalar_lea.vmem [#allocation0], 68
    %161 = vst.msk [vmem:[%s160] ss:$8 sm:$0xf] %vm159, %v158
    %s162 = scalar_lea.vmem [#allocation0], 68
    %163 = vst.msk [vmem:[%s162] ss:$8 sm:$0xf0] %vm159, %v158
    %s164 = scalar_lea.vmem %s0, 16
    %v165 = vld.sshfl [vmem:[%s164] sm:$0xff pattern:$0xb3a29180]
    %166 = vrot.lane.b32.xlu0 %v165, 64
    %v167 = vpop.permute.xlu0 %166
    %vm168 = vcmask 130048
    %s169 = scalar_lea.vmem [#allocation0], 132
    %170 = vst.msk [vmem:[%s169] ss:$8 sm:$0xf] %vm168, %v167
    %s171 = scalar_lea.vmem [#allocation0], 132
    %172 = vst.msk [vmem:[%s171] ss:$8 sm:$0xf0] %vm168, %v167
    %s173 = scalar_lea.vmem %s0, 20
    %v174 = vld.sshfl [vmem:[%s173] sm:$0xff pattern:$0xb3a29180]
    %175 = vrot.lane.b32.xlu0 %v174, 64
    %v176 = vpop.permute.xlu0 %175
    %vm177 = vcmask 130048
    %s178 = scalar_lea.vmem [#allocation0], 196
    %179 = vst.msk [vmem:[%s178] ss:$8 sm:$0xf] %vm177, %v176
    %s180 = scalar_lea.vmem [#allocation0], 196
    %181 = vst.msk [vmem:[%s180] ss:$8 sm:$0xf0] %vm177, %v176
    %v182 = vld.sshfl [vmem:[%s0] sm:$0xff pattern:$0xb3a29180]
    %183 = vrot.lane.b32.xlu0 %v182, 48
    %v184 = vpop.permute.xlu0 %183
    %vm185 = vcmask 130048
    %s186 = scalar_lea.vmem [#allocation0], 5
    %187 = vst.msk [vmem:[%s186] ss:$8 sm:$0xf] %vm185, %v184
    %s188 = scalar_lea.vmem [#allocation0], 5
    %189 = vst.msk [vmem:[%s188] ss:$8 sm:$0xf0] %vm185, %v184
    %s190 = scalar_lea.vmem %s0, 4
    %v191 = vld.sshfl [vmem:[%s190] sm:$0xff pattern:$0xb3a29180]
    %192 = vrot.lane.b32.xlu0 %v191, 48
    %v193 = vpop.permute.xlu0 %192
    %vm194 = vcmask 130048
    %s195 = scalar_lea.vmem [#allocation0], 69
    %196 = vst.msk [vmem:[%s195] ss:$8 sm:$0xf] %vm194, %v193
    %s197 = scalar_lea.vmem [#allocation0], 69
    %198 = vst.msk [vmem:[%s197] ss:$8 sm:$0xf0] %vm194, %v193
    %s199 = scalar_lea.vmem %s0, 16
    %v200 = vld.sshfl [vmem:[%s199] sm:$0xff pattern:$0xb3a29180]
    %201 = vrot.lane.b32.xlu0 %v200, 48
    %v202 = vpop.permute.xlu0 %201
    %vm203 = vcmask 130048
    %s204 = scalar_lea.vmem [#allocation0], 133
    %205 = vst.msk [vmem:[%s204] ss:$8 sm:$0xf] %vm203, %v202
    %s206 = scalar_lea.vmem [#allocation0], 133
    %207 = vst.msk [vmem:[%s206] ss:$8 sm:$0xf0] %vm203, %v202
    %s208 = scalar_lea.vmem %s0, 20
    %v209 = vld.sshfl [vmem:[%s208] sm:$0xff pattern:$0xb3a29180]
    %210 = vrot.lane.b32.xlu0 %v209, 48
    %v211 = vpop.permute.xlu0 %210
    %vm212 = vcmask 130048
    %s213 = scalar_lea.vmem [#allocation0], 197
    %214 = vst.msk [vmem:[%s213] ss:$8 sm:$0xf] %vm212, %v211
    %s215 = scalar_lea.vmem [#allocation0], 197
    %216 = vst.msk [vmem:[%s215] ss:$8 sm:$0xf0] %vm212, %v211
    %v217 = vld.sshfl [vmem:[%s0] sm:$0xff pattern:$0xb3a29180]
    %218 = vrot.lane.b32.xlu0 %v217, 32
    %v219 = vpop.permute.xlu0 %218
    %vm220 = vcmask 130048
    %s221 = scalar_lea.vmem [#allocation0], 6
    %222 = vst.msk [vmem:[%s221] ss:$8 sm:$0xf] %vm220, %v219
    %s223 = scalar_lea.vmem [#allocation0], 6
    %224 = vst.msk [vmem:[%s223] ss:$8 sm:$0xf0] %vm220, %v219
    %s225 = scalar_lea.vmem %s0, 4
    %v226 = vld.sshfl [vmem:[%s225] sm:$0xff pattern:$0xb3a29180]
    %227 = vrot.lane.b32.xlu0 %v226, 32
    %v228 = vpop.permute.xlu0 %227
    %vm229 = vcmask 130048
    %s230 = scalar_lea.vmem [#allocation0], 70
    %231 = vst.msk [vmem:[%s230] ss:$8 sm:$0xf] %vm229, %v228
    %s232 = scalar_lea.vmem [#allocation0], 70
    %233 = vst.msk [vmem:[%s232] ss:$8 sm:$0xf0] %vm229, %v228
    %s234 = scalar_lea.vmem %s0, 16
    %v235 = vld.sshfl [vmem:[%s234] sm:$0xff pattern:$0xb3a29180]
    %236 = vrot.lane.b32.xlu0 %v235, 32
    %v237 = vpop.permute.xlu0 %236
    %vm238 = vcmask 130048
    %s239 = scalar_lea.vmem [#allocation0], 134
    %240 = vst.msk [vmem:[%s239] ss:$8 sm:$0xf] %vm238, %v237
    %s241 = scalar_lea.vmem [#allocation0], 134
    %242 = vst.msk [vmem:[%s241] ss:$8 sm:$0xf0] %vm238, %v237
    %s243 = scalar_lea.vmem %s0, 20
    %v244 = vld.sshfl [vmem:[%s243] sm:$0xff pattern:$0xb3a29180]
    %245 = vrot.lane.b32.xlu0 %v244, 32
    %v246 = vpop.permute.xlu0 %245
    %vm247 = vcmask 130048
    %s248 = scalar_lea.vmem [#allocation0], 198
    %249 = vst.msk [vmem:[%s248] ss:$8 sm:$0xf] %vm247, %v246
    %s250 = scalar_lea.vmem [#allocation0], 198
    %251 = vst.msk [vmem:[%s250] ss:$8 sm:$0xf0] %vm247, %v246
    %v252 = vld.sshfl [vmem:[%s0] sm:$0xff pattern:$0xb3a29180]
    %253 = vrot.lane.b32.xlu0 %v252, 16
    %v254 = vpop.permute.xlu0 %253
    %vm255 = vcmask 130048
    %s256 = scalar_lea.vmem [#allocation0], 7
    %257 = vst.msk [vmem:[%s256] ss:$8 sm:$0xf] %vm255, %v254
    %s258 = scalar_lea.vmem [#allocation0], 7
    %259 = vst.msk [vmem:[%s258] ss:$8 sm:$0xf0] %vm255, %v254
    %s260 = scalar_lea.vmem %s0, 4
    %v261 = vld.sshfl [vmem:[%s260] sm:$0xff pattern:$0xb3a29180]
    %262 = vrot.lane.b32.xlu0 %v261, 16
    %v263 = vpop.permute.xlu0 %262
    %vm264 = vcmask 130048
    %s265 = scalar_lea.vmem [#allocation0], 71
    %266 = vst.msk [vmem:[%s265] ss:$8 sm:$0xf] %vm264, %v263
    %s267 = scalar_lea.vmem [#allocation0], 71
    %268 = vst.msk [vmem:[%s267] ss:$8 sm:$0xf0] %vm264, %v263
    %s269 = scalar_lea.vmem %s0, 16
    %v270 = vld.sshfl [vmem:[%s269] sm:$0xff pattern:$0xb3a29180]
    %271 = vrot.lane.b32.xlu0 %v270, 16
    %v272 = vpop.permute.xlu0 %271
    %vm273 = vcmask 130048
    %s274 = scalar_lea.vmem [#allocation0], 135
    %275 = vst.msk [vmem:[%s274] ss:$8 sm:$0xf] %vm273, %v272
    %s276 = scalar_lea.vmem [#allocation0], 135
    %277 = vst.msk [vmem:[%s276] ss:$8 sm:$0xf0] %vm273, %v272
    %s278 = scalar_lea.vmem %s0, 20
    %v279 = vld.sshfl [vmem:[%s278] sm:$0xff pattern:$0xb3a29180]
    %280 = vrot.lane.b32.xlu0 %v279, 16
    %v281 = vpop.permute.xlu0 %280
    %vm282 = vcmask 130048
    %s283 = scalar_lea.vmem [#allocation0], 199
    %284 = vst.msk [vmem:[%s283] ss:$8 sm:$0xf] %vm282, %v281
    %s285 = scalar_lea.vmem [#allocation0], 199
    %286 = vst.msk [vmem:[%s285] ss:$8 sm:$0xf0] %vm282, %v281
    %288 = vsyncadd [#allocation1], 0
    %s290 = sshll.u32 [#allocation0], 4
    %s291 = int_to_ptr.vmem [resolvable:$true] %s290
    %s292 = sshll.u32 %s1, 4
    %s293 = int_to_ptr.hbm [resolvable:$true] %s292
    %295 = dma.vmem_to_hbm [thread:$0]  %s291, 4096, %s293, [#allocation1]
    %297 = dma.done [#allocation1], 4096
    %298 = vsyncpa [#allocation1], 1

// kernel: shared_forward.1
$region0: #{shared_forward.1}
  #allocation0 [shape = 'u32[]', space=smem, size = 0x4, offset = 0x4, fixed_abs, tag = 'smem constant byte address 0x4 - core index']
  #allocation1 [shape = 'u32[72,128]{1,0:T(1,128)}', space=vmem, size = 0x9000, scoped, tag = 'internal scratch']
  %s0 = inlined_call_operand.vmem [shape: f32[6,4,256], index: 0, kind: input, shape index: {}]
  %s1 = inlined_call_operand.vmem [shape: f32[8,4], index: 1, kind: input, shape index: {}]
  %s2 = inlined_call_operand.vmem [shape: f32[8,1], index: 2, kind: input, shape index: {}]
  %s3 = inlined_call_operand.vmem [shape: f32[6,8,256], index: 3, kind: output, shape index: {}]
  %s4 = sld [smem:[#allocation0]]
  $region22: #{shared_forward.1} parent=0
    _
  %s6 = ssub.s32 1, %s4
  %s7 = scalar_select 0, %s6, %s4
  // Predicated region
  $region2: #{shared_forward.1} parent=0 // pred_check
    _
  $region3: #{shared_forward.1} parent=0 // pred_check_branch
    %9 = sbr.rel (0) target = $region5
  $region4: #{shared_forward.1} parent=0 // pred_region
    _
  $region5: #{shared_forward.1} parent=0 // pred_fallthru
    _
  // Predicated region
  $region6: #{shared_forward.1} parent=0 // pred_check
    _
  $region7: #{shared_forward.1} parent=0 // pred_check_branch
    %11 = sbr.rel (0) target = $region9
  $region8: #{shared_forward.1} parent=0 // pred_region
    _
  $region9: #{shared_forward.1} parent=0 // pred_fallthru
    _
  // Predicated region
  $region10: #{shared_forward.1} parent=0 // pred_check
    _
  $region11: #{shared_forward.1} parent=0 // pred_check_branch
    %13 = sbr.rel (0) target = $region13
  $region12: #{shared_forward.1} parent=0 // pred_region
    _
  $region13: #{shared_forward.1} parent=0 // pred_fallthru
    _
  %v14 = vld [vmem:[%s0] sm:$0xff]
  %v15 = vld [vmem:[%s0 + $0x8] sm:$0xff]
  %v16 = vld [vmem:[%s0 + $0x10] sm:$0xff]
  %v17 = vld [vmem:[%s0 + $0x18] sm:$0xff]
  %v18 = vld [vmem:[%s0 + $0x20] sm:$0xff]
  %v19 = vld [vmem:[%s0 + $0x28] sm:$0xff]
  %v20 = vld [vmem:[%s1] sm:$0xff]
  %v21 = vld [vmem:[%s2] sm:$0xff]
  %23 = vset.pattern.permute.xlu0 0
  %24 = vperm.xlu0 %23, %v20
  %v25 = vpop.permute.xlu0 %24
  %v33 = vperm.slane %v14, 0
  %v34 = vperm.slane %v14, 4
  %v35 = vperm.slane %v15, 0
  %v36 = vperm.slane %v15, 4
  %v37 = vperm.slane %v16, 0
  %v38 = vperm.slane %v16, 4
  %v39 = vperm.slane %v17, 0
  %v40 = vperm.slane %v17, 4
  %v41 = vperm.slane %v18, 0
  %v42 = vperm.slane %v18, 4
  %v43 = vperm.slane %v19, 0
  %v44 = vperm.slane %v19, 4
  %v57 = vperm.slane %v33, 0
  %v58 = vperm.slane %v34, 0
  %v59 = vperm.slane %v35, 0
  %v60 = vperm.slane %v36, 0
  %v61 = vperm.slane %v37, 0
  %v62 = vperm.slane %v38, 0
  %v63 = vperm.slane %v39, 0
  %v64 = vperm.slane %v40, 0
  %v65 = vperm.slane %v41, 0
  %v66 = vperm.slane %v42, 0
  %v67 = vperm.slane %v43, 0
  %v68 = vperm.slane %v44, 0
  %v69 = vmul.f32 %v25, %v57
  %v70 = vmul.f32 %v25, %v58
  %v71 = vmul.f32 %v25, %v59
  %v72 = vmul.f32 %v25, %v60
  %v73 = vmul.f32 %v25, %v61
  %v74 = vmul.f32 %v25, %v62
  %v75 = vmul.f32 %v25, %v63
  %v76 = vmul.f32 %v25, %v64
  %v77 = vmul.f32 %v25, %v65
  %v78 = vmul.f32 %v25, %v66
  %v79 = vmul.f32 %v25, %v67
  %v80 = vmul.f32 %v25, %v68
  %81 = vset.pattern.permute.xlu0 1
  %82 = vperm.xlu0 %81, %v20
  %v83 = vpop.permute.xlu0 %82
  %v85 = vperm.slane %v14, 1
  %v86 = vperm.slane %v14, 5
  %v87 = vperm.slane %v15, 1
  %v88 = vperm.slane %v15, 5
  %v89 = vperm.slane %v16, 1
  %v90 = vperm.slane %v16, 5
  %v91 = vperm.slane %v17, 1
  %v92 = vperm.slane %v17, 5
  %v93 = vperm.slane %v18, 1
  %v94 = vperm.slane %v18, 5
  %v95 = vperm.slane %v19, 1
  %v96 = vperm.slane %v19, 5
  %v109 = vperm.slane %v85, 1
  %v110 = vperm.slane %v86, 1
  %v111 = vperm.slane %v87, 1
  %v112 = vperm.slane %v88, 1
  %v113 = vperm.slane %v89, 1
  %v114 = vperm.slane %v90, 1
  %v115 = vperm.slane %v91, 1
  %v116 = vperm.slane %v92, 1
  %v117 = vperm.slane %v93, 1
  %v118 = vperm.slane %v94, 1
  %v119 = vperm.slane %v95, 1
  %v120 = vperm.slane %v96, 1
  %v121 = vmul.f32 %v83, %v109
  %v122 = vmul.f32 %v83, %v110
  %v123 = vmul.f32 %v83, %v111
  %v124 = vmul.f32 %v83, %v112
  %v125 = vmul.f32 %v83, %v113
  %v126 = vmul.f32 %v83, %v114
  %v127 = vmul.f32 %v83, %v115
  %v128 = vmul.f32 %v83, %v116
  %v129 = vmul.f32 %v83, %v117
  %v130 = vmul.f32 %v83, %v118
  %v131 = vmul.f32 %v83, %v119
  %v132 = vmul.f32 %v83, %v120
  %v133 = vadd.f32 %v69, %v121
  %v134 = vadd.f32 %v70, %v122
  %v135 = vadd.f32 %v71, %v123
  %v136 = vadd.f32 %v72, %v124
  %v137 = vadd.f32 %v73, %v125
  %v138 = vadd.f32 %v74, %v126
  %v139 = vadd.f32 %v75, %v127
  %v140 = vadd.f32 %v76, %v128
  %v141 = vadd.f32 %v77, %v129
  %v142 = vadd.f32 %v78, %v130
  %v143 = vadd.f32 %v79, %v131
  %v144 = vadd.f32 %v80, %v132
  %145 = vset.pattern.permute.xlu0 2
  %146 = vperm.xlu0 %145, %v20
  %v147 = vpop.permute.xlu0 %146
  %v149 = vperm.slane %v14, 2
  %v150 = vperm.slane %v14, 6
  %v151 = vperm.slane %v15, 2
  %v152 = vperm.slane %v15, 6
  %v153 = vperm.slane %v16, 2
  %v154 = vperm.slane %v16, 6
  %v155 = vperm.slane %v17, 2
  %v156 = vperm.slane %v17, 6
  %v157 = vperm.slane %v18, 2
  %v158 = vperm.slane %v18, 6
  %v159 = vperm.slane %v19, 2
  %v160 = vperm.slane %v19, 6
  %v173 = vperm.slane %v149, 2
  %v174 = vperm.slane %v150, 2
  %v175 = vperm.slane %v151, 2
  %v176 = vperm.slane %v152, 2
  %v177 = vperm.slane %v153, 2
  %v178 = vperm.slane %v154, 2
  %v179 = vperm.slane %v155, 2
  %v180 = vperm.slane %v156, 2
  %v181 = vperm.slane %v157, 2
  %v182 = vperm.slane %v158, 2
  %v183 = vperm.slane %v159, 2
  %v184 = vperm.slane %v160, 2
  %v185 = vmul.f32 %v147, %v173
  %v186 = vmul.f32 %v147, %v174
  %v187 = vmul.f32 %v147, %v175
  %v188 = vmul.f32 %v147, %v176
  %v189 = vmul.f32 %v147, %v177
  %v190 = vmul.f32 %v147, %v178
  %v191 = vmul.f32 %v147, %v179
  %v192 = vmul.f32 %v147, %v180
  %v193 = vmul.f32 %v147, %v181
  %v194 = vmul.f32 %v147, %v182
  %v195 = vmul.f32 %v147, %v183
  %v196 = vmul.f32 %v147, %v184
  %v197 = vadd.f32 %v133, %v185
  %v198 = vadd.f32 %v134, %v186
  %v199 = vadd.f32 %v135, %v187
  %v200 = vadd.f32 %v136, %v188
  %v201 = vadd.f32 %v137, %v189
  %v202 = vadd.f32 %v138, %v190
  %v203 = vadd.f32 %v139, %v191
  %v204 = vadd.f32 %v140, %v192
  %v205 = vadd.f32 %v141, %v193
  %v206 = vadd.f32 %v142, %v194
  %v207 = vadd.f32 %v143, %v195
  %v208 = vadd.f32 %v144, %v196
  %209 = vset.pattern.permute.xlu0 3
  %210 = vperm.xlu0 %209, %v20
  %v211 = vpop.permute.xlu0 %210
  %v213 = vperm.slane %v14, 3
  %v214 = vperm.slane %v14, 7
  %v215 = vperm.slane %v15, 3
  %v216 = vperm.slane %v15, 7
  %v217 = vperm.slane %v16, 3
  %v218 = vperm.slane %v16, 7
  %v219 = vperm.slane %v17, 3
  %v220 = vperm.slane %v17, 7
  %v221 = vperm.slane %v18, 3
  %v222 = vperm.slane %v18, 7
  %v223 = vperm.slane %v19, 3
  %v224 = vperm.slane %v19, 7
  %v237 = vperm.slane %v213, 3
  %v238 = vperm.slane %v214, 3
  %v239 = vperm.slane %v215, 3
  %v240 = vperm.slane %v216, 3
  %v241 = vperm.slane %v217, 3
  %v242 = vperm.slane %v218, 3
  %v243 = vperm.slane %v219, 3
  %v244 = vperm.slane %v220, 3
  %v245 = vperm.slane %v221, 3
  %v246 = vperm.slane %v222, 3
  %v247 = vperm.slane %v223, 3
  %v248 = vperm.slane %v224, 3
  %v249 = vmul.f32 %v211, %v237
  %v250 = vmul.f32 %v211, %v238
  %v251 = vmul.f32 %v211, %v239
  %v252 = vmul.f32 %v211, %v240
  %v253 = vmul.f32 %v211, %v241
  %v254 = vmul.f32 %v211, %v242
  %v255 = vmul.f32 %v211, %v243
  %v256 = vmul.f32 %v211, %v244
  %v257 = vmul.f32 %v211, %v245
  %v258 = vmul.f32 %v211, %v246
  %v259 = vmul.f32 %v211, %v247
  %v260 = vmul.f32 %v211, %v248
  %v261 = vadd.f32 %v197, %v249
  %v262 = vadd.f32 %v198, %v250
  %v263 = vadd.f32 %v199, %v251
  %v264 = vadd.f32 %v200, %v252
  %v265 = vadd.f32 %v201, %v253
  %v266 = vadd.f32 %v202, %v254
  %v267 = vadd.f32 %v203, %v255
  %v268 = vadd.f32 %v204, %v256
  %v269 = vadd.f32 %v205, %v257
  %v270 = vadd.f32 %v206, %v258
  %v271 = vadd.f32 %v207, %v259
  %v272 = vadd.f32 %v208, %v260
  %274 = vset.pattern.permute.xlu0 0
  %275 = vperm.xlu0 %274, %v21
  %v276 = vpop.permute.xlu0 %275
  %v278 = vadd.f32 %v261, %v276
  %v279 = vadd.f32 %v262, %v276
  %v280 = vadd.f32 %v263, %v276
  %v281 = vadd.f32 %v264, %v276
  %v282 = vadd.f32 %v265, %v276
  %v283 = vadd.f32 %v266, %v276
  %v284 = vadd.f32 %v267, %v276
  %v285 = vadd.f32 %v268, %v276
  %v286 = vadd.f32 %v269, %v276
  %v287 = vadd.f32 %v270, %v276
  %v288 = vadd.f32 %v271, %v276
  %v289 = vadd.f32 %v272, %v276
  %290 = vst [vmem:[%s3] sm:$0xff] %v278
  %291 = vst [vmem:[%s3 + $0x8] sm:$0xff] %v279
  %292 = vst [vmem:[%s3 + $0x10] sm:$0xff] %v280
  %293 = vst [vmem:[%s3 + $0x18] sm:$0xff] %v281
  %294 = vst [vmem:[%s3 + $0x20] sm:$0xff] %v282
  %295 = vst [vmem:[%s3 + $0x28] sm:$0xff] %v283
  %296 = vst [vmem:[%s3 + $0x30] sm:$0xff] %v284
  %297 = vst [vmem:[%s3 + $0x38] sm:$0xff] %v285
  %298 = vst [vmem:[%s3 + $0x40] sm:$0xff] %v286
  %299 = vst [vmem:[%s3 + $0x48] sm:$0xff] %v287
  %300 = vst [vmem:[%s3 + $0x50] sm:$0xff] %v288
  %301 = vst [vmem:[%s3 + $0x58] sm:$0xff] %v289
  // Predicated region
  $region14: #{shared_forward.1} parent=0 // pred_check
    _
  $region15: #{shared_forward.1} parent=0 // pred_check_branch
    %303 = sbr.rel (0) target = $region17
  $region16: #{shared_forward.1} parent=0 // pred_region
    _
  $region17: #{shared_forward.1} parent=0 // pred_fallthru
    _
  // Predicated region
  $region18: #{shared_forward.1} parent=0 // pred_check
    _
  $region19: #{shared_forward.1} parent=0 // pred_check_branch
    %305 = sbr.rel (0) target = $region21
  $region20: #{shared_forward.1} parent=0 // pred_region
    _
  $region21: #{shared_forward.1} parent=0 // pred_fallthru
    _

</llo_original>
